<compile_context>
chip_gen: v7x
topology: tpu7x:2x2x1
jax: 0.10.0
libtpu: 0.0.40
codegen_flags: <defaults>
</compile_context>

<pallas_src>
import math
import functools

import jax
import jax.numpy as jnp
from jax.experimental import pallas as pl
from jax.experimental.pallas import tpu as pltpu


def _head_kernel(x_ref, w_ref, b_ref, bias_ref, o_ref, *,
                 head_size, block_b, seq_len, compute_dtype):
    # x_ref:    (block_b, T, C)   activations
    # w_ref:    (C, 3H)           fused [Q|K|V] weights (Q pre-scaled by 1/sqrt(H))
    # b_ref:    (1, 3H)           fused biases (Q bias pre-scaled)
    # bias_ref: (block_b, 1, T)   additive padding bias (0 keep / -1e9 masked)
    # o_ref:    (block_b, T, H)
    H = head_size
    T = seq_len
    C = x_ref.shape[-1]
    md = compute_dtype  # MXU operand dtype (f32 or bf16); accumulation is f32

    # Fused QKV projection: one (block_b*T, C) @ (C, 3H) MXU matmul.
    # (reshape done on the f32 ref view; sublane-aligned since T % 8 == 0)
    x2 = x_ref[...].reshape(block_b * T, C).astype(md)
    qkv = jnp.dot(x2, w_ref[...], preferred_element_type=jnp.float32)
    qkv = qkv + b_ref[...]                         # (block_b*T, 3H), f32
    qkv = qkv.reshape(block_b, T, 3 * H)

    q = qkv[:, :, 0:H]            # 1/sqrt(H) scale already folded into W_q / b_q
    k = qkv[:, :, H:2 * H]
    v = qkv[:, :, 2 * H:3 * H]

    # Batched q @ k^T without an explicit transpose (contract last dims on MXU).
    scores = jnp.einsum("btd,bsd->bts", q.astype(md), k.astype(md),
                        preferred_element_type=jnp.float32)
    scores = scores + bias_ref[...]                # additive padding mask bias

    # Numerically stable softmax; elementwise math kept in f32 (v5e-friendly).
    m = jnp.max(scores, axis=-1, keepdims=True)
    e = jnp.exp(scores - m)
    s = jnp.sum(e, axis=-1, keepdims=True)
    attn = e * pl.reciprocal(s, approx=False)      # exact: keeps tight f32 match

    # TODO(synk): dropout on attention weights is identity here (eval mode); a
    # training-mode variant would use pltpu.prng_seed / pltpu.prng_random_bits.

    out = jnp.einsum("bts,bsd->btd", attn.astype(md), v.astype(md),
                     preferred_element_type=jnp.float32)
    o_ref[...] = out.astype(o_ref.dtype)


def head_forward(x, wq, bq, wk, bk, wv, bv, padding_mask=None, *,
                 compute_dtype=jnp.float32, block_b=None):
    """x: (B, T, C); weights (C, H); biases (H,); padding_mask: (B, T) or None.

    compute_dtype=jnp.bfloat16 casts the MXU matmul operands to bf16
    (recommended on v6e/v7x); accumulation and softmax stay f32.
    """
    B, T, C = x.shape
    H = wq.shape[1]
    out_dtype = x.dtype

    if block_b is None:
        block_b = B                       # whole batch per grid step (tiny shapes)
    assert B % block_b == 0, "block_b must divide B"
    nb = B // block_b

    # Fuse the three projections into one (C, 3H) matmul and fold the
    # 1/sqrt(head_size) attention scale into the Query weights/bias (one-time).
    scale = 1.0 / math.sqrt(H)
    w_qkv = jnp.concatenate([wq * scale, wk, wv], axis=1)                 # (C, 3H)
    b_qkv = jnp.concatenate([bq * scale, bk, bv], axis=0).reshape(1, 3 * H)
    w_qkv = w_qkv.astype(compute_dtype)   # halve operand DMA/vreg footprint in bf16 mode

    # Additive padding bias: 0.0 = keep, -1e9 = masked (matches masked_fill).
    if padding_mask is None:
        mask_bias = jnp.zeros((B, 1, T), dtype=jnp.float32)
    else:
        mask_bias = jnp.where(padding_mask.reshape(B, 1, T) == 0,
                              jnp.float32(-1.0e9), jnp.float32(0.0))

    kernel = functools.partial(_head_kernel, head_size=H, block_b=block_b,
                               seq_len=T, compute_dtype=compute_dtype)

    # TODO(synk): for multi-head production shapes, batch N heads per kernel so
    # the output last dim reaches >=128 lanes (unmasked vst) and tile over the
    # KV dim (online softmax) when T is large enough to stress v7x's 64 MiB VMEM.
    return pl.pallas_call(
        kernel,
        out_shape=jax.ShapeDtypeStruct((B, T, H), out_dtype),
        grid_spec=pltpu.PrefetchScalarGridSpec(
            num_scalar_prefetch=0,
            grid=(nb,),
            in_specs=[
                pl.BlockSpec((block_b, T, C), lambda i: (i, 0, 0)),   # x
                pl.BlockSpec((C, 3 * H), lambda i: (0, 0)),           # fused W
                pl.BlockSpec((1, 3 * H), lambda i: (0, 0)),           # fused b
                pl.BlockSpec((block_b, 1, T), lambda i: (i, 0, 0)),   # mask bias
            ],
            out_specs=pl.BlockSpec((block_b, T, H), lambda i: (i, 0, 0)),
        ),
        compiler_params=pltpu.CompilerParams(
            dimension_semantics=("parallel",)),
    )(x, w_qkv, b_qkv, mask_bias)


def _reference(x, wq, bq, wk, bk, wv, bv, padding_mask, head_size):
    q = x @ wq + bq
    k = x @ wk + bk
    v = x @ wv + bv
    scores = jnp.einsum("btd,bsd->bts", q, k) / math.sqrt(head_size)
    if padding_mask is not None:
        scores = jnp.where(padding_mask[:, None, :] == 0, -1.0e9, scores)
    attn = jax.nn.softmax(scores, axis=-1)
    return attn @ v


if __name__ == "__main__":
    # Small shapes consistent with the module: batch=2, seq=8, n_embd=32, head_size=16
    B, T, C, H = 2, 8, 32, 16
    key = jax.random.PRNGKey(0)
    kx, kq, kbq, kk, kbk, kv, kbv = jax.random.split(key, 7)

    x = jax.random.normal(kx, (B, T, C), dtype=jnp.float32)

    s = 1.0 / math.sqrt(C)   # matches nn.Linear's uniform(-1/sqrt(in), 1/sqrt(in)) range
    wq = jax.random.uniform(kq, (C, H), jnp.float32, -s, s)
    bq = jax.random.uniform(kbq, (H,), jnp.float32, -s, s)
    wk = jax.random.uniform(kk, (C, H), jnp.float32, -s, s)
    bk = jax.random.uniform(kbk, (H,), jnp.float32, -s, s)
    wv = jax.random.uniform(kv, (C, H), jnp.float32, -s, s)
    bv = jax.random.uniform(kbv, (H,), jnp.float32, -s, s)

    # padding mask: last two positions of batch 1 are padded
    padding_mask = jnp.ones((B, T), dtype=jnp.int32).at[1, -2:].set(0)

    ref = _reference(x, wq, bq, wk, bk, wv, bv, padding_mask, H)

    # f32 operand path (portable, exact)
    out = head_forward(x, wq, bq, wk, bk, wv, bv, padding_mask)
    out = jax.block_until_ready(out)
    assert out.shape == (B, T, H)
    assert jnp.allclose(out, ref, atol=1e-5, rtol=1e-4), "f32 mismatch vs reference"

    # bf16 MXU-operand path (recommended on v6e/v7x); softmax stays f32.
    out_bf16 = head_forward(x, wq, bq, wk, bk, wv, bv, padding_mask,
                            compute_dtype=jnp.bfloat16)
    out_bf16 = jax.block_until_ready(out_bf16)
    assert jnp.allclose(out_bf16, ref, atol=5e-2, rtol=5e-2), "bf16 mismatch vs reference"

    print("KERNEL_OK")
</pallas_src>

<mosaic_0001>
module attributes {stable_mosaic.version = 11 : i64} {
  func.func @_head_kernel(%arg0: i32, %arg1: memref<2x8x32xf32, #tpu.memory_space<vmem>>, %arg2: memref<32x48xf32, #tpu.memory_space<vmem>>, %arg3: memref<1x48xf32, #tpu.memory_space<vmem>>, %arg4: memref<2x1x8xf32, #tpu.memory_space<vmem>>, %arg5: memref<2x8x16xf32, #tpu.memory_space<vmem>>) attributes {dimension_semantics = [#tpu.dimension_semantics<parallel>], iteration_bounds = array<i64: 1>, scalar_prefetch = 0 : i64, scratch_operands = 0 : i64, tpu.core_type = #tpu.core_type<tc>, window_params = [{transform_indices = @transform_0, window_bounds = array<i64: 2, 8, 32>}, {pipeline_mode = #tpu.pipeline_mode<synchronous>, transform_indices = @transform_1, window_bounds = array<i64: 32, 48>}, {pipeline_mode = #tpu.pipeline_mode<synchronous>, transform_indices = @transform_2, window_bounds = array<i64: 1, 48>}, {transform_indices = @transform_3, window_bounds = array<i64: 2, 1, 8>}, {transform_indices = @transform_4, window_bounds = array<i64: 2, 8, 16>}]} {
    %c0 = arith.constant 0 : index
    %c0_0 = arith.constant 0 : index
    %c0_1 = arith.constant 0 : index
    %0 = vector.load %arg1[%c0, %c0_0, %c0_1] : memref<2x8x32xf32, #tpu.memory_space<vmem>>, vector<2x8x32xf32>
    %1 = vector.shape_cast %0 : vector<2x8x32xf32> to vector<16x32xf32>
    %c0_2 = arith.constant 0 : index
    %c0_3 = arith.constant 0 : index
    %2 = vector.load %arg2[%c0_2, %c0_3] : memref<32x48xf32, #tpu.memory_space<vmem>>, vector<32x48xf32>
    %cst = arith.constant dense<0.000000e+00> : vector<16x48xf32>
    %3 = tpu.matmul %1, %2, %cst {dimension_numbers = #tpu.dot_dimension_numbers<[1], [0], [0], [1], [0, 0, 1, 1], [], []>} : vector<16x32xf32>, vector<32x48xf32>, vector<16x48xf32> -> vector<16x48xf32>
    %c0_4 = arith.constant 0 : index
    %c0_5 = arith.constant 0 : index
    %4 = vector.load %arg3[%c0_4, %c0_5] : memref<1x48xf32, #tpu.memory_space<vmem>>, vector<1x48xf32>
    %5 = vector.broadcast %4 : vector<1x48xf32> to vector<16x48xf32>
    %6 = arith.addf %3, %5 : vector<16x48xf32>
    %7 = vector.shape_cast %6 : vector<16x48xf32> to vector<2x8x48xf32>
    %8 = vector.extract_strided_slice %7 {offsets = [0, 0, 0], sizes = [2, 8, 16], strides = [1, 1, 1]} : vector<2x8x48xf32> to vector<2x8x16xf32>
    %9 = vector.extract_strided_slice %7 {offsets = [0, 0, 16], sizes = [2, 8, 16], strides = [1, 1, 1]} : vector<2x8x48xf32> to vector<2x8x16xf32>
    %10 = vector.extract_strided_slice %7 {offsets = [0, 0, 32], sizes = [2, 8, 16], strides = [1, 1, 1]} : vector<2x8x48xf32> to vector<2x8x16xf32>
    "tpu.trace_start"() <{level = 10 : i32, message = "btd,bsd->bts"}> : () -> ()
    %cst_6 = arith.constant dense<0.000000e+00> : vector<2x8x8xf32>
    %11 = tpu.matmul %8, %9, %cst_6 {dimension_numbers = #tpu.dot_dimension_numbers<[2], [2], [1], [1], [0, 0, 0, 1, 1, 1], [0], [0]>} : vector<2x8x16xf32>, vector<2x8x16xf32>, vector<2x8x8xf32> -> vector<2x8x8xf32>
    "tpu.trace_stop"() : () -> ()
    %c0_7 = arith.constant 0 : index
    %c0_8 = arith.constant 0 : index
    %c0_9 = arith.constant 0 : index
    %12 = vector.load %arg4[%c0_7, %c0_8, %c0_9] : memref<2x1x8xf32, #tpu.memory_space<vmem>>, vector<2x1x8xf32>
    %13 = vector.broadcast %12 : vector<2x1x8xf32> to vector<2x8x8xf32>
    %14 = arith.addf %11, %13 : vector<2x8x8xf32>
    %cst_10 = arith.constant dense<0xFF800000> : vector<2x8xf32>
    %15 = vector.multi_reduction <maximumf>, %14, %cst_10 [2] : vector<2x8x8xf32> to vector<2x8xf32>
    %16 = vector.shape_cast %15 : vector<2x8xf32> to vector<2x8x1xf32>
    %17 = vector.broadcast %16 : vector<2x8x1xf32> to vector<2x8x8xf32>
    %18 = arith.subf %14, %17 : vector<2x8x8xf32>
    %19 = math.exp %18 : vector<2x8x8xf32>
    %cst_11 = arith.constant dense<0.000000e+00> : vector<2x8xf32>
    %20 = vector.multi_reduction <add>, %19, %cst_11 [2] : vector<2x8x8xf32> to vector<2x8xf32>
    %21 = vector.shape_cast %20 : vector<2x8xf32> to vector<2x8x1xf32>
    %22 = tpu.reciprocal %21 : vector<2x8x1xf32> -> vector<2x8x1xf32>
    %23 = vector.broadcast %22 : vector<2x8x1xf32> to vector<2x8x8xf32>
    %24 = arith.mulf %19, %23 : vector<2x8x8xf32>
    "tpu.trace_start"() <{level = 10 : i32, message = "bts,bsd->btd"}> : () -> ()
    %cst_12 = arith.constant dense<0.000000e+00> : vector<2x8x16xf32>
    %25 = tpu.matmul %24, %10, %cst_12 {dimension_numbers = #tpu.dot_dimension_numbers<[2], [1], [1], [2], [0, 0, 0, 1, 1, 2], [0], [0]>} : vector<2x8x8xf32>, vector<2x8x16xf32>, vector<2x8x16xf32> -> vector<2x8x16xf32>
    "tpu.trace_stop"() : () -> ()
    %c0_13 = arith.constant 0 : index
    %c0_14 = arith.constant 0 : index
    %c0_15 = arith.constant 0 : index
    %26 = vector.load %arg5[%c0_13, %c0_14, %c0_15] : memref<2x8x16xf32, #tpu.memory_space<vmem>>, vector<2x8x16xf32>
    tpu.vector_store %arg5[%c0_13, %c0_14, %c0_15], %25 {strides = array<i32>} : memref<2x8x16xf32, #tpu.memory_space<vmem>>, vector<2x8x16xf32>,
    return
  }
  func.func @transform_0(%arg0: i32) -> (i32, i32, i32) {
    %c0_i32 = arith.constant 0 : i32
    %c0_i32_0 = arith.constant 0 : i32
    %c0_i32_1 = arith.constant 0 : i32
    return %arg0, %c0_i32, %c0_i32_0 : i32, i32, i32
  }
  func.func @transform_1(%arg0: i32) -> (i32, i32) {
    %c0_i32 = arith.constant 0 : i32
    %c0_i32_0 = arith.constant 0 : i32
    %c0_i32_1 = arith.constant 0 : i32
    return %c0_i32, %c0_i32_0 : i32, i32
  }
  func.func @transform_2(%arg0: i32) -> (i32, i32) {
    %c0_i32 = arith.constant 0 : i32
    %c0_i32_0 = arith.constant 0 : i32
    %c0_i32_1 = arith.constant 0 : i32
    return %c0_i32, %c0_i32_0 : i32, i32
  }
  func.func @transform_3(%arg0: i32) -> (i32, i32, i32) {
    %c0_i32 = arith.constant 0 : i32
    %c0_i32_0 = arith.constant 0 : i32
    %c0_i32_1 = arith.constant 0 : i32
    return %arg0, %c0_i32, %c0_i32_0 : i32, i32, i32
  }
  func.func @transform_4(%arg0: i32) -> (i32, i32, i32) {
    %c0_i32 = arith.constant 0 : i32
    %c0_i32_0 = arith.constant 0 : i32
    %c0_i32_1 = arith.constant 0 : i32
    return %arg0, %c0_i32, %c0_i32_0 : i32, i32, i32
  }
}

</mosaic_0001>

<llo_original>
// kernel: tpu_custom_call.1
$region0: #{tpu_custom_call.1}
  #allocation0 [shape = 'u32[]', space=smem, size = 0x4, offset = 0x4, fixed_abs, tag = 'smem constant byte address 0x4 - core index']
  #allocation1 [shape = 'u32[144,128]{1,0:T(1,128)}', space=vmem, size = 0x12000, scoped, tag = 'internal scratch']
  %s0 = inlined_call_operand.hbm [shape: f32[2,8,32], index: 0, kind: input, shape index: {}]
  %s1 = inlined_call_operand.hbm [shape: f32[32,48], index: 1, kind: input, shape index: {}]
  %s2 = inlined_call_operand.vmem [shape: f32[1,48], index: 2, kind: input, shape index: {}]
  %s3 = inlined_call_operand.vmem [shape: f32[2,1,8], index: 3, kind: input, shape index: {}]
  %s4 = inlined_call_operand.hbm [shape: f32[2,8,16], index: 4, kind: output, shape index: {}]
  %s5 = sld [smem:[#allocation0]]
  $region34: #{tpu_custom_call.1} parent=0
    _
  %s7 = ssub.s32 1, %s5
  %s8 = scalar_select 0, %s7, %s5
  $region1: #{tpu_custom_call.1} parent=0
    #allocation2 [shape = 'u8[8192]{0}', space=vmem, size = 0x2000, scoped, tag = 'input window, operand 0, single buffered']
    #allocation3 [shape = 's32[1]{0}', space=sflag, size = 0x4, scoped, tag = 'scoped memory for tpu_custom_call.1']
    #allocation4 [shape = 's32[1]{0}', space=sflag, size = 0x4, scoped, tag = 'scoped memory for tpu_custom_call.1']
    #allocation5 [shape = 'u8[16384]{0}', space=vmem, size = 0x4000, scoped, tag = 'input window, operand 1, single buffered']
    #allocation6 [shape = 's32[1]{0}', space=sflag, size = 0x4, scoped, tag = 'scoped memory for tpu_custom_call.1']
    #allocation7 [shape = 'u8[8192]{0}', space=vmem, size = 0x2000, scoped, tag = 'output window, operand 0, single buffered']
    %9 = vsyncpa [#allocation3], 0
    %10 = vsyncpa [#allocation6], 0
    %11 = vsyncpa [#allocation4], 0
    // Predicated region
    $region2: #{tpu_custom_call.1} parent=1 // pred_check
      _
    $region3: #{tpu_custom_call.1} parent=1 // pred_check_branch
      %13 = sbr.rel (0) target = $region5
    $region4: #{tpu_custom_call.1} parent=1 // pred_region
      %s15 = ssub.s32 256, 256
      %16 = vsyncadd [#allocation3], %s15
      %s17 = sshll.u32 [#allocation2], 4
      %s18 = int_to_ptr.vmem [resolvable:$true] %s17
      %23 = dma.hbm_to_vmem [thread:$0]  %s0, 256, %s18, [#allocation3], 128, 128, 8
    $region5: #{tpu_custom_call.1} parent=1 // pred_fallthru
      _
    // Predicated region
    $region6: #{tpu_custom_call.1} parent=1 // pred_check
      _
    $region7: #{tpu_custom_call.1} parent=1 // pred_check_branch
      %25 = sbr.rel (0) target = $region9
    $region8: #{tpu_custom_call.1} parent=1 // pred_region
      %s27 = ssub.s32 512, 512
      %28 = vsyncadd [#allocation6], %s27
      %s29 = sshll.u32 [#allocation5], 4
      %s30 = int_to_ptr.vmem [resolvable:$true] %s29
      %35 = dma.hbm_to_vmem [thread:$0]  %s1, 512, %s30, [#allocation6], 128, 128, 8
    $region9: #{tpu_custom_call.1} parent=1 // pred_fallthru
      _
    // Predicated region
    $region10: #{tpu_custom_call.1} parent=1 // pred_check
      _
    $region11: #{tpu_custom_call.1} parent=1 // pred_check_branch
      %37 = sbr.rel (0) target = $region13
    $region12: #{tpu_custom_call.1} parent=1 // pred_region
      _
    $region13: #{tpu_custom_call.1} parent=1 // pred_fallthru
      _
    // Predicated region
    $region14: #{tpu_custom_call.1} parent=1 // pred_check
      _
    $region15: #{tpu_custom_call.1} parent=1 // pred_check_branch
      %39 = sbr.rel (0) target = $region17
    $region16: #{tpu_custom_call.1} parent=1 // pred_region
      _
    $region17: #{tpu_custom_call.1} parent=1 // pred_fallthru
      _
    // Predicated region
    $region18: #{tpu_custom_call.1} parent=1 // pred_check
      _
    $region19: #{tpu_custom_call.1} parent=1 // pred_check_branch
      %41 = sbr.rel (0) target = $region21
    $region20: #{tpu_custom_call.1} parent=1 // pred_region
      %42 = dma.done [#allocation3], 256
    $region21: #{tpu_custom_call.1} parent=1 // pred_fallthru
      _
    // Predicated region
    $region22: #{tpu_custom_call.1} parent=1 // pred_check
      _
    $region23: #{tpu_custom_call.1} parent=1 // pred_check_branch
      %44 = sbr.rel (0) target = $region25
    $region24: #{tpu_custom_call.1} parent=1 // pred_region
      %45 = dma.done [#allocation6], 512
    $region25: #{tpu_custom_call.1} parent=1 // pred_fallthru
      _
    %v46 = vld [vmem:[#allocation2] sm:$0xff]
    %v47 = vld [vmem:[#allocation2 + $0x8] sm:$0xff]
    %v48 = vld [vmem:[#allocation5] sm:$0xff]
    %v49 = vld [vmem:[#allocation5 + $0x8] sm:$0xff]
    %v50 = vld [vmem:[#allocation5 + $0x10] sm:$0xff]
    %v51 = vld [vmem:[#allocation5 + $0x18] sm:$0xff]
    %v52 = vld [vmem:[%s2] sm:$0x1]
    %v54 = vlaneseq
    %v55 = vshrl.u32 %v54, 7
    %v56 = vsub.s32 0, %v55
    %v57 = vrot.slane %v52, %v56
    %vm59 = vcmask 261120
    %v61 = vsel %vm59, %v46, 0
    %v64 = vsel %vm59, %v47, 0
    %66 = vmatprep.subr.mxu0 0.0
    %67 = vmatpush1.msra.mxu0 %v48
    %68 = vmatprep.subr.mxu0 0.0
    %69 = vmatpush1.msra.mxu0 %v49
    %70 = vmatprep.subr.mxu0 0.0
    %71 = vmatpush1.msra.mxu0 %v50
    %72 = vmatprep.subr.mxu0 0.0
    %73 = vmatpush1.msra.mxu0 %v51
    %74 = vmatprep.subr.mxu0 0.0
    %75 = vmatpush1.msra.mxu0 0.0
    %76 = vmatprep.subr.mxu0 0.0
    %77 = vmatpush1.msra.mxu0 0.0
    %78 = vmatprep.subr.mxu0 0.0
    %79 = vmatpush1.msra.mxu0 0.0
    %80 = vmatprep.subr.mxu0 0.0
    %81 = vmatpush1.msra.mxu0 0.0
    %82 = vmatprep.subr.mxu0 0.0
    %83 = vmatpush1.msra.mxu0 0.0
    %84 = vmatprep.subr.mxu0 0.0
    %85 = vmatpush1.msra.mxu0 0.0
    %86 = vmatprep.subr.mxu0 0.0
    %87 = vmatpush1.msra.mxu0 0.0
    %88 = vmatprep.subr.mxu0 0.0
    %89 = vmatpush1.msra.mxu0 0.0
    %90 = vmatprep.subr.mxu0 0.0
    %91 = vmatpush1.msra.mxu0 0.0
    %92 = vmatprep.subr.mxu0 0.0
    %93 = vmatpush1.msra.mxu0 0.0
    %94 = vmatprep.subr.mxu0 0.0
    %95 = vmatpush1.msra.mxu0 0.0
    %96 = vmatprep.subr.mxu0 0.0
    %97 = vmatpush1.msra.mxu0 0.0
    %98 = vmatprep.subr.mxu0 0.0
    %99 = vmatpush1.msra.mxu0 0.0
    %100 = vmatprep.subr.mxu0 0.0
    %101 = vmatpush1.msra.mxu0 0.0
    %102 = vmatprep.subr.mxu0 0.0
    %103 = vmatpush1.msra.mxu0 0.0
    %104 = vmatprep.subr.mxu0 0.0
    %105 = vmatpush1.msra.mxu0 0.0
    %106 = vmatprep.subr.mxu0 0.0
    %107 = vmatpush1.msra.mxu0 0.0
    %108 = vmatprep.subr.mxu0 0.0
    %109 = vmatpush1.msra.mxu0 0.0
    %110 = vmatprep.subr.mxu0 0.0
    %111 = vmatpush1.msra.mxu0 0.0
    %112 = vmatprep.subr.mxu0 0.0
    %113 = vmatpush1.msra.mxu0 0.0
    %114 = vmatprep.subr.mxu0 0.0
    %115 = vmatpush1.msra.mxu0 0.0
    %116 = vmatprep.subr.mxu0 0.0
    %117 = vmatpush1.msra.mxu0 0.0
    %118 = vmatprep.subr.mxu0 0.0
    %119 = vmatpush1.msra.mxu0 0.0
    %120 = vmatprep.subr.mxu0 0.0
    %121 = vmatpush1.msra.mxu0 0.0
    %122 = vmatprep.subr.mxu0 0.0
    %123 = vmatpush1.msra.mxu0 0.0
    %124 = vmatprep.subr.mxu0 0.0
    %125 = vmatpush1.msra.mxu0 0.0
    %126 = vmatprep.subr.mxu0 0.0
    %127 = vmatpush1.msra.mxu0 0.0
    %128 = vmatprep.subr.mxu0 0.0
    %129 = vmatpush1.msra.mxu0 0.0
    %130 = vmatprep.mubr.f32.mxu0 0.0
    %131 = vmatmul.mubr.f32.gmra.mrb[0].mxu0 %v61
    %v132 = vpop.f32.mrb[0].mxu0
    %v133 = vadd.f32 %v57, %v132
    %v134 = vpop.f32.mrb[0].mxu0
    %135 = vmatprep.mubr.f32.mxu0 0.0
    %136 = vmatmul.mubr.f32.gmra.mrb[0].mxu0 %v64
    %v137 = vpop.f32.mrb[0].mxu0
    %v138 = vadd.f32 %v57, %v137
    %v139 = vpop.f32.mrb[0].mxu0
    %140 = vdwg.mxu0
    %v141 = vld [vmem:[%s3] sm:$0x1]
    %v142 = vld [vmem:[%s3 + $0x1] sm:$0x1]
    %v145 = vlaneseq
    %v146 = vshrl.u32 %v145, 7
    %v147 = vsub.s32 0, %v146
    %v148 = vrot.slane %v141, %v147
    %v149 = vlaneseq
    %v150 = vshrl.u32 %v149, 7
    %v151 = vsub.s32 0, %v150
    %v152 = vrot.slane %v142, %v151
    %156 = vrot.lane.b32.xlu0 %v133, 112
    %v157 = vpop.permute.xlu0 %156
    %vm158 = vcmask 130048
    %v159 = vsel %vm158, %v133, 0
    %v161 = vsel %vm158, %v157, 0
    %163 = vmatprep.subr.mxu0 0.0
    %164 = vmatpush1.xpose.msra.mxu0 %v161
    %165 = vmatprep.subr.mxu0 0.0
    %166 = vmatpush1.xpose.msra.mxu0 0.0
    %167 = vmatprep.subr.mxu0 0.0
    %168 = vmatpush1.xpose.msra.mxu0 0.0
    %169 = vmatprep.subr.mxu0 0.0
    %170 = vmatpush1.xpose.msra.mxu0 0.0
    %171 = vmatprep.subr.mxu0 0.0
    %172 = vmatpush1.xpose.msra.mxu0 0.0
    %173 = vmatprep.subr.mxu0 0.0
    %174 = vmatpush1.xpose.msra.mxu0 0.0
    %175 = vmatprep.subr.mxu0 0.0
    %176 = vmatpush1.xpose.msra.mxu0 0.0
    %177 = vmatprep.subr.mxu0 0.0
    %178 = vmatpush1.xpose.msra.mxu0 0.0
    %179 = vmatprep.subr.mxu0 0.0
    %180 = vmatpush1.xpose.msra.mxu0 0.0
    %181 = vmatprep.subr.mxu0 0.0
    %182 = vmatpush1.xpose.msra.mxu0 0.0
    %183 = vmatprep.subr.mxu0 0.0
    %184 = vmatpush1.xpose.msra.mxu0 0.0
    %185 = vmatprep.subr.mxu0 0.0
    %186 = vmatpush1.xpose.msra.mxu0 0.0
    %187 = vmatprep.subr.mxu0 0.0
    %188 = vmatpush1.xpose.msra.mxu0 0.0
    %189 = vmatprep.subr.mxu0 0.0
    %190 = vmatpush1.xpose.msra.mxu0 0.0
    %191 = vmatprep.subr.mxu0 0.0
    %192 = vmatpush1.xpose.msra.mxu0 0.0
    %193 = vmatprep.subr.mxu0 0.0
    %194 = vmatpush1.xpose.msra.mxu0 0.0
    %195 = vmatprep.subr.mxu0 0.0
    %196 = vmatpush1.xpose.msra.mxu0 0.0
    %197 = vmatprep.subr.mxu0 0.0
    %198 = vmatpush1.xpose.msra.mxu0 0.0
    %199 = vmatprep.subr.mxu0 0.0
    %200 = vmatpush1.xpose.msra.mxu0 0.0
    %201 = vmatprep.subr.mxu0 0.0
    %202 = vmatpush1.xpose.msra.mxu0 0.0
    %203 = vmatprep.subr.mxu0 0.0
    %204 = vmatpush1.xpose.msra.mxu0 0.0
    %205 = vmatprep.subr.mxu0 0.0
    %206 = vmatpush1.xpose.msra.mxu0 0.0
    %207 = vmatprep.subr.mxu0 0.0
    %208 = vmatpush1.xpose.msra.mxu0 0.0
    %209 = vmatprep.subr.mxu0 0.0
    %210 = vmatpush1.xpose.msra.mxu0 0.0
    %211 = vmatprep.subr.mxu0 0.0
    %212 = vmatpush1.xpose.msra.mxu0 0.0
    %213 = vmatprep.subr.mxu0 0.0
    %214 = vmatpush1.xpose.msra.mxu0 0.0
    %215 = vmatprep.subr.mxu0 0.0
    %216 = vmatpush1.xpose.msra.mxu0 0.0
    %217 = vmatprep.subr.mxu0 0.0
    %218 = vmatpush1.xpose.msra.mxu0 0.0
    %219 = vmatprep.subr.mxu0 0.0
    %220 = vmatpush1.xpose.msra.mxu0 0.0
    %221 = vmatprep.subr.mxu0 0.0
    %222 = vmatpush1.xpose.msra.mxu0 0.0
    %223 = vmatprep.subr.mxu0 0.0
    %224 = vmatpush1.xpose.msra.mxu0 0.0
    %225 = vmatprep.subr.mxu0 0.0
    %226 = vmatpush1.xpose.msra.mxu0 0.0
    %227 = vmatprep.mubr.f32.mxu0 0.0
    %228 = vmatmul.mubr.f32.gmra.mrb[0].mxu0 %v159
    %v229 = vpop.f32.mrb[0].mxu0
    %v230 = vadd.f32 %v148, %v229
    %v231 = vpop.f32.mrb[0].mxu0
    %232 = vdwg.mxu0
    %234 = vrot.lane.b32.xlu0 %v138, 112
    %v235 = vpop.permute.xlu0 %234
    %v236 = vsel %vm158, %v138, 0
    %v238 = vsel %vm158, %v235, 0
    %240 = vmatprep.subr.mxu0 0.0
    %241 = vmatpush1.xpose.msra.mxu0 %v238
    %242 = vmatprep.subr.mxu0 0.0
    %243 = vmatpush1.xpose.msra.mxu0 0.0
    %244 = vmatprep.subr.mxu0 0.0
    %245 = vmatpush1.xpose.msra.mxu0 0.0
    %246 = vmatprep.subr.mxu0 0.0
    %247 = vmatpush1.xpose.msra.mxu0 0.0
    %248 = vmatprep.subr.mxu0 0.0
    %249 = vmatpush1.xpose.msra.mxu0 0.0
    %250 = vmatprep.subr.mxu0 0.0
    %251 = vmatpush1.xpose.msra.mxu0 0.0
    %252 = vmatprep.subr.mxu0 0.0
    %253 = vmatpush1.xpose.msra.mxu0 0.0
    %254 = vmatprep.subr.mxu0 0.0
    %255 = vmatpush1.xpose.msra.mxu0 0.0
    %256 = vmatprep.subr.mxu0 0.0
    %257 = vmatpush1.xpose.msra.mxu0 0.0
    %258 = vmatprep.subr.mxu0 0.0
    %259 = vmatpush1.xpose.msra.mxu0 0.0
    %260 = vmatprep.subr.mxu0 0.0
    %261 = vmatpush1.xpose.msra.mxu0 0.0
    %262 = vmatprep.subr.mxu0 0.0
    %263 = vmatpush1.xpose.msra.mxu0 0.0
    %264 = vmatprep.subr.mxu0 0.0
    %265 = vmatpush1.xpose.msra.mxu0 0.0
    %266 = vmatprep.subr.mxu0 0.0
    %267 = vmatpush1.xpose.msra.mxu0 0.0
    %268 = vmatprep.subr.mxu0 0.0
    %269 = vmatpush1.xpose.msra.mxu0 0.0
    %270 = vmatprep.subr.mxu0 0.0
    %271 = vmatpush1.xpose.msra.mxu0 0.0
    %272 = vmatprep.subr.mxu0 0.0
    %273 = vmatpush1.xpose.msra.mxu0 0.0
    %274 = vmatprep.subr.mxu0 0.0
    %275 = vmatpush1.xpose.msra.mxu0 0.0
    %276 = vmatprep.subr.mxu0 0.0
    %277 = vmatpush1.xpose.msra.mxu0 0.0
    %278 = vmatprep.subr.mxu0 0.0
    %279 = vmatpush1.xpose.msra.mxu0 0.0
    %280 = vmatprep.subr.mxu0 0.0
    %281 = vmatpush1.xpose.msra.mxu0 0.0
    %282 = vmatprep.subr.mxu0 0.0
    %283 = vmatpush1.xpose.msra.mxu0 0.0
    %284 = vmatprep.subr.mxu0 0.0
    %285 = vmatpush1.xpose.msra.mxu0 0.0
    %286 = vmatprep.subr.mxu0 0.0
    %287 = vmatpush1.xpose.msra.mxu0 0.0
    %288 = vmatprep.subr.mxu0 0.0
    %289 = vmatpush1.xpose.msra.mxu0 0.0
    %290 = vmatprep.subr.mxu0 0.0
    %291 = vmatpush1.xpose.msra.mxu0 0.0
    %292 = vmatprep.subr.mxu0 0.0
    %293 = vmatpush1.xpose.msra.mxu0 0.0
    %294 = vmatprep.subr.mxu0 0.0
    %295 = vmatpush1.xpose.msra.mxu0 0.0
    %296 = vmatprep.subr.mxu0 0.0
    %297 = vmatpush1.xpose.msra.mxu0 0.0
    %298 = vmatprep.subr.mxu0 0.0
    %299 = vmatpush1.xpose.msra.mxu0 0.0
    %300 = vmatprep.subr.mxu0 0.0
    %301 = vmatpush1.xpose.msra.mxu0 0.0
    %302 = vmatprep.subr.mxu0 0.0
    %303 = vmatpush1.xpose.msra.mxu0 0.0
    %304 = vmatprep.mubr.f32.mxu0 0.0
    %305 = vmatmul.mubr.f32.gmra.mrb[0].mxu0 %v236
    %v306 = vpop.f32.mrb[0].mxu0
    %v307 = vadd.f32 %v152, %v306
    %v308 = vpop.f32.mrb[0].mxu0
    %309 = vdwg.mxu0
    %vm310 = vcmask 64512
    %v311 = vsel %vm310, %v230, -inf
    %312 = vmax.xlane.f32.xlu0 %v311
    %v313 = vpop.xlane.xlu0 %312
    %v314 = vsel %vm310, %v307, -inf
    %315 = vmax.xlane.f32.xlu0 %v314
    %v316 = vpop.xlane.xlu0 %315
    %v317 = vsub.f32 %v230, %v313
    %v318 = vsub.f32 %v307, %v316
    %v319 = vmul.f32 %v317, 1.442695
    %v320 = vpow.pop %v319
    %v321 = vmul.f32 %v318, 1.442695
    %v322 = vpow.pop %v321
    %v323 = vsel %vm310, %v320, 0.0
    %324 = vadd.xlane.f32.xlu0 %v323
    %v325 = vpop.xlane.xlu0 %324
    %v326 = vsel %vm310, %v322, 0.0
    %327 = vadd.xlane.f32.xlu0 %v326
    %v328 = vpop.xlane.xlu0 %327
    %v329 = vrcp.pop %v325
    %v330 = vrcp.pop %v328
    %v331 = vmul.f32 %v320, %v329
    %v332 = vmul.f32 %v322, %v330
    %333 = vrot.lane.b32.xlu0 %v133, 96
    %v334 = vpop.permute.xlu0 %333
    %v337 = vsel %vm310, %v331, 0
    %339 = vmatprep.subr.mxu0 0.0
    %340 = vmatpush1.msra.mxu0 %v334
    %341 = vmatprep.subr.mxu0 0.0
    %342 = vmatpush1.msra.mxu0 0.0
    %343 = vmatprep.subr.mxu0 0.0
    %344 = vmatpush1.msra.mxu0 0.0
    %345 = vmatprep.subr.mxu0 0.0
    %346 = vmatpush1.msra.mxu0 0.0
    %347 = vmatprep.subr.mxu0 0.0
    %348 = vmatpush1.msra.mxu0 0.0
    %349 = vmatprep.subr.mxu0 0.0
    %350 = vmatpush1.msra.mxu0 0.0
    %351 = vmatprep.subr.mxu0 0.0
    %352 = vmatpush1.msra.mxu0 0.0
    %353 = vmatprep.subr.mxu0 0.0
    %354 = vmatpush1.msra.mxu0 0.0
    %355 = vmatprep.subr.mxu0 0.0
    %356 = vmatpush1.msra.mxu0 0.0
    %357 = vmatprep.subr.mxu0 0.0
    %358 = vmatpush1.msra.mxu0 0.0
    %359 = vmatprep.subr.mxu0 0.0
    %360 = vmatpush1.msra.mxu0 0.0
    %361 = vmatprep.subr.mxu0 0.0
    %362 = vmatpush1.msra.mxu0 0.0
    %363 = vmatprep.subr.mxu0 0.0
    %364 = vmatpush1.msra.mxu0 0.0
    %365 = vmatprep.subr.mxu0 0.0
    %366 = vmatpush1.msra.mxu0 0.0
    %367 = vmatprep.subr.mxu0 0.0
    %368 = vmatpush1.msra.mxu0 0.0
    %369 = vmatprep.subr.mxu0 0.0
    %370 = vmatpush1.msra.mxu0 0.0
    %371 = vmatprep.subr.mxu0 0.0
    %372 = vmatpush1.msra.mxu0 0.0
    %373 = vmatprep.subr.mxu0 0.0
    %374 = vmatpush1.msra.mxu0 0.0
    %375 = vmatprep.subr.mxu0 0.0
    %376 = vmatpush1.msra.mxu0 0.0
    %377 = vmatprep.subr.mxu0 0.0
    %378 = vmatpush1.msra.mxu0 0.0
    %379 = vmatprep.subr.mxu0 0.0
    %380 = vmatpush1.msra.mxu0 0.0
    %381 = vmatprep.subr.mxu0 0.0
    %382 = vmatpush1.msra.mxu0 0.0
    %383 = vmatprep.subr.mxu0 0.0
    %384 = vmatpush1.msra.mxu0 0.0
    %385 = vmatprep.subr.mxu0 0.0
    %386 = vmatpush1.msra.mxu0 0.0
    %387 = vmatprep.subr.mxu0 0.0
    %388 = vmatpush1.msra.mxu0 0.0
    %389 = vmatprep.subr.mxu0 0.0
    %390 = vmatpush1.msra.mxu0 0.0
    %391 = vmatprep.subr.mxu0 0.0
    %392 = vmatpush1.msra.mxu0 0.0
    %393 = vmatprep.subr.mxu0 0.0
    %394 = vmatpush1.msra.mxu0 0.0
    %395 = vmatprep.subr.mxu0 0.0
    %396 = vmatpush1.msra.mxu0 0.0
    %397 = vmatprep.subr.mxu0 0.0
    %398 = vmatpush1.msra.mxu0 0.0
    %399 = vmatprep.subr.mxu0 0.0
    %400 = vmatpush1.msra.mxu0 0.0
    %401 = vmatprep.subr.mxu0 0.0
    %402 = vmatpush1.msra.mxu0 0.0
    %403 = vmatprep.mubr.f32.mxu0 0.0
    %404 = vmatmul.mubr.f32.gmra.mrb[0].mxu0 %v337
    %v405 = vpop.f32.mrb[0].mxu0
    %v406 = vadd.f32 0.0, %v405
    %v407 = vpop.f32.mrb[0].mxu0
    %408 = vdwg.mxu0
    %409 = vrot.lane.b32.xlu0 %v138, 96
    %v410 = vpop.permute.xlu0 %409
    %v413 = vsel %vm310, %v332, 0
    %415 = vmatprep.subr.mxu0 0.0
    %416 = vmatpush1.msra.mxu0 %v410
    %417 = vmatprep.subr.mxu0 0.0
    %418 = vmatpush1.msra.mxu0 0.0
    %419 = vmatprep.subr.mxu0 0.0
    %420 = vmatpush1.msra.mxu0 0.0
    %421 = vmatprep.subr.mxu0 0.0
    %422 = vmatpush1.msra.mxu0 0.0
    %423 = vmatprep.subr.mxu0 0.0
    %424 = vmatpush1.msra.mxu0 0.0
    %425 = vmatprep.subr.mxu0 0.0
    %426 = vmatpush1.msra.mxu0 0.0
    %427 = vmatprep.subr.mxu0 0.0
    %428 = vmatpush1.msra.mxu0 0.0
    %429 = vmatprep.subr.mxu0 0.0
    %430 = vmatpush1.msra.mxu0 0.0
    %431 = vmatprep.subr.mxu0 0.0
    %432 = vmatpush1.msra.mxu0 0.0
    %433 = vmatprep.subr.mxu0 0.0
    %434 = vmatpush1.msra.mxu0 0.0
    %435 = vmatprep.subr.mxu0 0.0
    %436 = vmatpush1.msra.mxu0 0.0
    %437 = vmatprep.subr.mxu0 0.0
    %438 = vmatpush1.msra.mxu0 0.0
    %439 = vmatprep.subr.mxu0 0.0
    %440 = vmatpush1.msra.mxu0 0.0
    %441 = vmatprep.subr.mxu0 0.0
    %442 = vmatpush1.msra.mxu0 0.0
    %443 = vmatprep.subr.mxu0 0.0
    %444 = vmatpush1.msra.mxu0 0.0
    %445 = vmatprep.subr.mxu0 0.0
    %446 = vmatpush1.msra.mxu0 0.0
    %447 = vmatprep.subr.mxu0 0.0
    %448 = vmatpush1.msra.mxu0 0.0
    %449 = vmatprep.subr.mxu0 0.0
    %450 = vmatpush1.msra.mxu0 0.0
    %451 = vmatprep.subr.mxu0 0.0
    %452 = vmatpush1.msra.mxu0 0.0
    %453 = vmatprep.subr.mxu0 0.0
    %454 = vmatpush1.msra.mxu0 0.0
    %455 = vmatprep.subr.mxu0 0.0
    %456 = vmatpush1.msra.mxu0 0.0
    %457 = vmatprep.subr.mxu0 0.0
    %458 = vmatpush1.msra.mxu0 0.0
    %459 = vmatprep.subr.mxu0 0.0
    %460 = vmatpush1.msra.mxu0 0.0
    %461 = vmatprep.subr.mxu0 0.0
    %462 = vmatpush1.msra.mxu0 0.0
    %463 = vmatprep.subr.mxu0 0.0
    %464 = vmatpush1.msra.mxu0 0.0
    %465 = vmatprep.subr.mxu0 0.0
    %466 = vmatpush1.msra.mxu0 0.0
    %467 = vmatprep.subr.mxu0 0.0
    %468 = vmatpush1.msra.mxu0 0.0
    %469 = vmatprep.subr.mxu0 0.0
    %470 = vmatpush1.msra.mxu0 0.0
    %471 = vmatprep.subr.mxu0 0.0
    %472 = vmatpush1.msra.mxu0 0.0
    %473 = vmatprep.subr.mxu0 0.0
    %474 = vmatpush1.msra.mxu0 0.0
    %475 = vmatprep.subr.mxu0 0.0
    %476 = vmatpush1.msra.mxu0 0.0
    %477 = vmatprep.subr.mxu0 0.0
    %478 = vmatpush1.msra.mxu0 0.0
    %479 = vmatprep.mubr.f32.mxu0 0.0
    %480 = vmatmul.mubr.f32.gmra.mrb[0].mxu0 %v413
    %v481 = vpop.f32.mrb[0].mxu0
    %v482 = vadd.f32 0.0, %v481
    %v483 = vpop.f32.mrb[0].mxu0
    %484 = vdwg.mxu0
    %485 = vst.msk [vmem:[#allocation7] sm:$0xff] %vm158, %v406
    %486 = vst.msk [vmem:[#allocation7 + $0x8] sm:$0xff] %vm158, %v482
    // Predicated region
    $region26: #{tpu_custom_call.1} parent=1 // pred_check
      _
    $region27: #{tpu_custom_call.1} parent=1 // pred_check_branch
      %488 = sbr.rel (0) target = $region29
    $region28: #{tpu_custom_call.1} parent=1 // pred_region
      %s490 = ssub.s32 256, 256
      %491 = vsyncadd [#allocation4], %s490
      %s492 = sshll.u32 [#allocation7], 4
      %s493 = int_to_ptr.vmem [resolvable:$true] %s492
      %498 = dma.vmem_to_hbm [thread:$0]  %s493, 256, %s4, [#allocation4], 128, 128, 8
    $region29: #{tpu_custom_call.1} parent=1 // pred_fallthru
      _
    // Predicated region
    $region30: #{tpu_custom_call.1} parent=1 // pred_check
      _
    $region31: #{tpu_custom_call.1} parent=1 // pred_check_branch
      %500 = sbr.rel (0) target = $region33
    $region32: #{tpu_custom_call.1} parent=1 // pred_region
      %501 = dma.done [#allocation4], 256
    $region33: #{tpu_custom_call.1} parent=1 // pred_fallthru
      _
    %502 = vsyncpa [#allocation3], 1
    %503 = vsyncpa [#allocation6], 1
    %504 = vsyncpa [#allocation4], 1

</llo_original>
